<compile_context>
chip_gen: v5e
topology: v5e:2x2
jax: 0.10.0
libtpu: 0.0.40
codegen_flags: <defaults>
</compile_context>

<pallas_src>
import functools

import jax
import jax.numpy as jnp
from jax.experimental import pallas as pl
from jax.experimental.pallas import tpu as pltpu


def _elu(x):
    # ELU(alpha=1): x if x > 0 else exp(x) - 1
    return jnp.where(x > 0, x, jnp.exp(x) - 1.0)


def _im2col(act, K, pad, L):
    """(C, L) -> (K*C, L): row k*C+c holds act[c] zero-padded, shifted by k."""
    C = act.shape[0]
    if pad > 0:
        z = jnp.zeros((C, pad), act.dtype)
        apad = jnp.concatenate([z, act, z], axis=1)        # (C, L + 2*pad)
    else:
        apad = act
    cols = [apad[:, k:k + L] for k in range(K)]            # K static lane shifts
    return jnp.concatenate(cols, axis=0) if K > 1 else cols[0]


def basic_block_kernel(x_ref, s0_ref, b0_ref, w1_ref, s1_ref, b1_ref, w2_ref,
                       o_ref, *, K, pad, L, B_TILE, mxu_dtype):
    """B_TILE batch elements per grid step; channels on sublanes, L on lanes.

    x_ref : (B_TILE, Cin, L)   activations (f32)
    s*/b* : (C, 1)             folded eval-mode BatchNorm scale / bias (f32)
    w1_ref: (Cout, K*Cin)      im2col-concatenated conv1 weight (mxu_dtype)
    w2_ref: (Cout, K*Cout)     im2col-concatenated conv2 weight (mxu_dtype)
    o_ref : (B_TILE, Cout, L)
    """
    s0 = s0_ref[...]
    b0 = b0_ref[...]

    acts = []
    cols = []
    for b in range(B_TILE):                                # static unroll
        act = _elu(x_ref[b] * s0 + b0)                     # BN0 + ELU (+dropout0=id)
        acts.append(act)
        cols.append(_im2col(act, K, pad, L))
    act0 = jnp.concatenate(acts, axis=1) if B_TILE > 1 else acts[0]  # (Cin, BT*L)
    xcol = jnp.concatenate(cols, axis=1) if B_TILE > 1 else cols[0]  # (K*Cin, BT*L)

    # conv1: a single MXU matmul over the whole batch tile.
    h = jnp.dot(w1_ref[...], xcol.astype(mxu_dtype),
                preferred_element_type=jnp.float32)        # (Cout, BT*L)

    # BN1 + ELU (+ dropout1 = id), f32 elementwise.
    h = _elu(h * s1_ref[...] + b1_ref[...])

    # conv2: rebuild im2col per batch element (padding must not leak across
    # batch boundaries), then one matmul.
    cols2 = [_im2col(h[:, b * L:(b + 1) * L], K, pad, L) for b in range(B_TILE)]
    hcol = jnp.concatenate(cols2, axis=1) if B_TILE > 1 else cols2[0]  # (K*Cout, BT*L)
    out = jnp.dot(w2_ref[...], hcol.astype(mxu_dtype),
                  preferred_element_type=jnp.float32)      # (Cout, BT*L)

    # residual: identity = post-BN0/ELU activation (downsample=None).
    res = out + act0
    for b in range(B_TILE):
        o_ref[b] = res[:, b * L:(b + 1) * L].astype(o_ref.dtype)


def _pick_batch_tile(N):
    # Amortize the ~0.35us/step grid overhead, but keep >=2 grid steps so both
    # v7x TensorCores get work under dimension_semantics=("parallel",).
    if N < 4:
        return 1
    for bt in (8, 4, 2):
        if N % bt == 0 and N // bt >= 2:
            return bt
    return 1


def basic_block_forward(x_ncl, params, kernel_size, *, use_bf16_matmul=True):
    """x_ncl: (N, C, L) float32, PyTorch Conv1d layout.  Returns (N, C, L)."""
    N, Cin, L = x_ncl.shape
    K = kernel_size
    pad = K // 2
    eps = 1e-5

    w1 = params["conv1_w"]          # (Cout, Cin, K)  PyTorch Conv1d layout
    w2 = params["conv2_w"]          # (Cout, Cout, K)
    Cout = w1.shape[0]
    # downsample=None => residual add requires matching channel counts.
    assert Cin == Cout, (
        f"BasicBlock with downsample=None needs inplanes == planes, "
        f"got {Cin} vs {Cout}")

    mxu_dtype = jnp.bfloat16 if use_bf16_matmul else jnp.float32

    # Fold eval-mode BatchNorm into per-channel scale/bias, shaped (C, 1):
    # channels on sublanes, broadcast along the L lane axis.
    s0 = params["bn0_gamma"] / jnp.sqrt(params["bn0_var"] + eps)
    b0 = params["bn0_beta"] - params["bn0_mean"] * s0
    s1 = params["bn1_gamma"] / jnp.sqrt(params["bn1_var"] + eps)
    b1 = params["bn1_beta"] - params["bn1_mean"] * s1

    # im2col weight: W_cat[co, k*C + c] = w[co, c, k]  ->  (Cout, K*C)
    w1_cat = jnp.transpose(w1, (0, 2, 1)).reshape(Cout, K * Cin).astype(mxu_dtype)
    w2_cat = jnp.transpose(w2, (0, 2, 1)).reshape(Cout, K * Cout).astype(mxu_dtype)

    B_TILE = _pick_batch_tile(N)
    grid = (N // B_TILE,)

    kernel = functools.partial(basic_block_kernel, K=K, pad=pad, L=L,
                               B_TILE=B_TILE, mxu_dtype=mxu_dtype)
    out = pl.pallas_call(
        kernel,
        out_shape=jax.ShapeDtypeStruct((N, Cout, L), jnp.float32),
        grid_spec=pltpu.PrefetchScalarGridSpec(
            num_scalar_prefetch=0,
            grid=grid,
            in_specs=[
                pl.BlockSpec((B_TILE, Cin, L), lambda n: (n, 0, 0)),
                pl.BlockSpec((Cin, 1), lambda n: (0, 0)),
                pl.BlockSpec((Cin, 1), lambda n: (0, 0)),
                pl.BlockSpec((Cout, K * Cin), lambda n: (0, 0)),
                pl.BlockSpec((Cout, 1), lambda n: (0, 0)),
                pl.BlockSpec((Cout, 1), lambda n: (0, 0)),
                pl.BlockSpec((Cout, K * Cout), lambda n: (0, 0)),
            ],
            out_specs=pl.BlockSpec((B_TILE, Cout, L), lambda n: (n, 0, 0)),
        ),
        compiler_params=pltpu.CompilerParams(
            dimension_semantics=("parallel",),
            vmem_limit_bytes=32 * 1024 * 1024),
    )(x_ncl.astype(jnp.float32),
      s0.reshape(Cin, 1), b0.reshape(Cin, 1), w1_cat,
      s1.reshape(Cout, 1), b1.reshape(Cout, 1), w2_cat)

    return out


def reference_forward(x, params, kernel_size):
    """Pure-JAX reference of the eval-mode PyTorch forward (NCL layout)."""
    eps = 1e-5
    pad = kernel_size // 2

    def bn(x, g, b, m, v):
        return ((x - m[None, :, None]) / jnp.sqrt(v[None, :, None] + eps)
                * g[None, :, None] + b[None, :, None])

    dn = ("NCH", "OIH", "NCH")
    out0 = _elu(bn(x, params["bn0_gamma"], params["bn0_beta"],
                   params["bn0_mean"], params["bn0_var"]))
    out = jax.lax.conv_general_dilated(out0, params["conv1_w"], (1,),
                                       [(pad, pad)], dimension_numbers=dn)
    out = _elu(bn(out, params["bn1_gamma"], params["bn1_beta"],
                  params["bn1_mean"], params["bn1_var"]))
    out = jax.lax.conv_general_dilated(out, params["conv2_w"], (1,),
                                       [(pad, pad)], dimension_numbers=dn)
    return out + out0


def init_params(key, inplanes, planes, kernel_size):
    ks = jax.random.split(key, 10)
    return {
        "bn0_gamma": jax.random.uniform(ks[0], (inplanes,), jnp.float32, 0.5, 1.5),
        "bn0_beta": jax.random.normal(ks[1], (inplanes,), jnp.float32) * 0.1,
        "bn0_mean": jax.random.normal(ks[2], (inplanes,), jnp.float32) * 0.1,
        "bn0_var": jax.random.uniform(ks[3], (inplanes,), jnp.float32, 0.5, 1.5),
        "conv1_w": jax.random.normal(ks[4], (planes, inplanes, kernel_size),
                                     jnp.float32) * 0.1,
        "bn1_gamma": jax.random.uniform(ks[5], (planes,), jnp.float32, 0.5, 1.5),
        "bn1_beta": jax.random.normal(ks[6], (planes,), jnp.float32) * 0.1,
        "bn1_mean": jax.random.normal(ks[7], (planes,), jnp.float32) * 0.1,
        "bn1_var": jax.random.uniform(ks[8], (planes,), jnp.float32, 0.5, 1.5),
        "conv2_w": jax.random.normal(ks[9], (planes, planes, kernel_size),
                                     jnp.float32) * 0.1,
    }


if __name__ == "__main__":
    # Small shapes: batch=2, inplanes=planes=8, seq_len=16, kernel_size=3
    # (stride=1, downsample=None -> residual shapes match).
    N, C, L, K = 2, 8, 16, 3
    key = jax.random.PRNGKey(0)
    k_x, k_p = jax.random.split(key)
    x = jax.random.normal(k_x, (N, C, L), jnp.float32)
    params = init_params(k_p, inplanes=C, planes=C, kernel_size=K)

    ref = reference_forward(x, params, kernel_size=K)

    # Exact-semantics check with f32 MXU operands.
    out_f32 = jax.block_until_ready(
        basic_block_forward(x, params, kernel_size=K, use_bf16_matmul=False))
    assert out_f32.shape == ref.shape == (N, C, L)
    assert jnp.allclose(out_f32, ref, atol=1e-4, rtol=1e-4), (
        f"f32 max abs err = {jnp.max(jnp.abs(out_f32 - ref))}")

    # Performance path: bf16 MXU operands, f32 accumulation (looser tolerance).
    out_bf16 = jax.block_until_ready(
        basic_block_forward(x, params, kernel_size=K, use_bf16_matmul=True))
    assert out_bf16.shape == (N, C, L)
    assert jnp.allclose(out_bf16, ref, atol=5e-2, rtol=5e-2), (
        f"bf16 max abs err = {jnp.max(jnp.abs(out_bf16 - ref))}")

    print("KERNEL_OK")
</pallas_src>

<mosaic_0001>
module attributes {stable_mosaic.version = 11 : i64} {
  func.func @basic_block_kernel(%arg0: i32, %arg1: memref<1x8x16xf32, #tpu.memory_space<vmem>>, %arg2: memref<8x1xf32, #tpu.memory_space<vmem>>, %arg3: memref<8x1xf32, #tpu.memory_space<vmem>>, %arg4: memref<8x24xf32, #tpu.memory_space<vmem>>, %arg5: memref<8x1xf32, #tpu.memory_space<vmem>>, %arg6: memref<8x1xf32, #tpu.memory_space<vmem>>, %arg7: memref<8x24xf32, #tpu.memory_space<vmem>>, %arg8: memref<1x8x16xf32, #tpu.memory_space<vmem>>) attributes {dimension_semantics = [#tpu.dimension_semantics<parallel>], iteration_bounds = array<i64: 2>, scalar_prefetch = 0 : i64, scratch_operands = 0 : i64, tpu.core_type = #tpu.core_type<tc>, window_params = [{transform_indices = @transform_0, window_bounds = array<i64: 1, 8, 16>}, {pipeline_mode = #tpu.pipeline_mode<synchronous>, transform_indices = @transform_1, window_bounds = array<i64: 8, 1>}, {pipeline_mode = #tpu.pipeline_mode<synchronous>, transform_indices = @transform_2, window_bounds = array<i64: 8, 1>}, {pipeline_mode = #tpu.pipeline_mode<synchronous>, transform_indices = @transform_3, window_bounds = array<i64: 8, 24>}, {pipeline_mode = #tpu.pipeline_mode<synchronous>, transform_indices = @transform_4, window_bounds = array<i64: 8, 1>}, {pipeline_mode = #tpu.pipeline_mode<synchronous>, transform_indices = @transform_5, window_bounds = array<i64: 8, 1>}, {pipeline_mode = #tpu.pipeline_mode<synchronous>, transform_indices = @transform_6, window_bounds = array<i64: 8, 24>}, {transform_indices = @transform_7, window_bounds = array<i64: 1, 8, 16>}]} {
    %c0 = arith.constant 0 : index
    %c0_0 = arith.constant 0 : index
    %0 = vector.load %arg2[%c0, %c0_0] : memref<8x1xf32, #tpu.memory_space<vmem>>, vector<8x1xf32>
    %c0_1 = arith.constant 0 : index
    %c0_2 = arith.constant 0 : index
    %1 = vector.load %arg3[%c0_1, %c0_2] : memref<8x1xf32, #tpu.memory_space<vmem>>, vector<8x1xf32>
    %c0_3 = arith.constant 0 : index
    %c0_4 = arith.constant 0 : index
    %c0_5 = arith.constant 0 : index
    %2 = vector.load %arg1[%c0_3, %c0_4, %c0_5] : memref<1x8x16xf32, #tpu.memory_space<vmem>>, vector<1x8x16xf32>
    %3 = vector.shape_cast %2 : vector<1x8x16xf32> to vector<8x16xf32>
    %4 = vector.broadcast %0 : vector<8x1xf32> to vector<8x16xf32>
    %5 = arith.mulf %3, %4 : vector<8x16xf32>
    %6 = vector.broadcast %1 : vector<8x1xf32> to vector<8x16xf32>
    %7 = arith.addf %5, %6 : vector<8x16xf32>
    %cst = arith.constant 0.000000e+00 : f32
    %8 = vector.broadcast %cst : f32 to vector<8x16xf32>
    %9 = arith.cmpf ogt, %7, %8 : vector<8x16xf32>
    %10 = math.exp %7 : vector<8x16xf32>
    %cst_6 = arith.constant 1.000000e+00 : f32
    %11 = vector.broadcast %cst_6 : f32 to vector<8x16xf32>
    %12 = arith.subf %10, %11 : vector<8x16xf32>
    %13 = arith.select %9, %7, %12 : vector<8x16xi1>, vector<8x16xf32>
    %cst_7 = arith.constant 0.000000e+00 : f32
    %14 = vector.broadcast %cst_7 : f32 to vector<8x1xf32>
    %15 = tpu.concatenate %14, %13, %14 in 1 : vector<8x1xf32>, vector<8x16xf32>, vector<8x1xf32> -> vector<8x18xf32>
    %16 = vector.extract_strided_slice %15 {offsets = [0, 0], sizes = [8, 16], strides = [1, 1]} : vector<8x18xf32> to vector<8x16xf32>
    %17 = vector.extract_strided_slice %15 {offsets = [0, 1], sizes = [8, 16], strides = [1, 1]} : vector<8x18xf32> to vector<8x16xf32>
    %18 = vector.extract_strided_slice %15 {offsets = [0, 2], sizes = [8, 16], strides = [1, 1]} : vector<8x18xf32> to vector<8x16xf32>
    %19 = tpu.concatenate %16, %17, %18 in 0 : vector<8x16xf32>, vector<8x16xf32>, vector<8x16xf32> -> vector<24x16xf32>
    %c0_8 = arith.constant 0 : index
    %c0_9 = arith.constant 0 : index
    %20 = vector.load %arg4[%c0_8, %c0_9] : memref<8x24xf32, #tpu.memory_space<vmem>>, vector<8x24xf32>
    %cst_10 = arith.constant dense<0.000000e+00> : vector<8x16xf32>
    %21 = tpu.matmul %20, %19, %cst_10 {dimension_numbers = #tpu.dot_dimension_numbers<[1], [0], [0], [1], [0, 0, 1, 1], [], []>} : vector<8x24xf32>, vector<24x16xf32>, vector<8x16xf32> -> vector<8x16xf32>
    %c0_11 = arith.constant 0 : index
    %c0_12 = arith.constant 0 : index
    %22 = vector.load %arg5[%c0_11, %c0_12] : memref<8x1xf32, #tpu.memory_space<vmem>>, vector<8x1xf32>
    %23 = vector.broadcast %22 : vector<8x1xf32> to vector<8x16xf32>
    %24 = arith.mulf %21, %23 : vector<8x16xf32>
    %c0_13 = arith.constant 0 : index
    %c0_14 = arith.constant 0 : index
    %25 = vector.load %arg6[%c0_13, %c0_14] : memref<8x1xf32, #tpu.memory_space<vmem>>, vector<8x1xf32>
    %26 = vector.broadcast %25 : vector<8x1xf32> to vector<8x16xf32>
    %27 = arith.addf %24, %26 : vector<8x16xf32>
    %cst_15 = arith.constant 0.000000e+00 : f32
    %28 = vector.broadcast %cst_15 : f32 to vector<8x16xf32>
    %29 = arith.cmpf ogt, %27, %28 : vector<8x16xf32>
    %30 = math.exp %27 : vector<8x16xf32>
    %cst_16 = arith.constant 1.000000e+00 : f32
    %31 = vector.broadcast %cst_16 : f32 to vector<8x16xf32>
    %32 = arith.subf %30, %31 : vector<8x16xf32>
    %33 = arith.select %29, %27, %32 : vector<8x16xi1>, vector<8x16xf32>
    %cst_17 = arith.constant 0.000000e+00 : f32
    %34 = vector.broadcast %cst_17 : f32 to vector<8x1xf32>
    %35 = tpu.concatenate %34, %33, %34 in 1 : vector<8x1xf32>, vector<8x16xf32>, vector<8x1xf32> -> vector<8x18xf32>
    %36 = vector.extract_strided_slice %35 {offsets = [0, 0], sizes = [8, 16], strides = [1, 1]} : vector<8x18xf32> to vector<8x16xf32>
    %37 = vector.extract_strided_slice %35 {offsets = [0, 1], sizes = [8, 16], strides = [1, 1]} : vector<8x18xf32> to vector<8x16xf32>
    %38 = vector.extract_strided_slice %35 {offsets = [0, 2], sizes = [8, 16], strides = [1, 1]} : vector<8x18xf32> to vector<8x16xf32>
    %39 = tpu.concatenate %36, %37, %38 in 0 : vector<8x16xf32>, vector<8x16xf32>, vector<8x16xf32> -> vector<24x16xf32>
    %c0_18 = arith.constant 0 : index
    %c0_19 = arith.constant 0 : index
    %40 = vector.load %arg7[%c0_18, %c0_19] : memref<8x24xf32, #tpu.memory_space<vmem>>, vector<8x24xf32>
    %cst_20 = arith.constant dense<0.000000e+00> : vector<8x16xf32>
    %41 = tpu.matmul %40, %39, %cst_20 {dimension_numbers = #tpu.dot_dimension_numbers<[1], [0], [0], [1], [0, 0, 1, 1], [], []>} : vector<8x24xf32>, vector<24x16xf32>, vector<8x16xf32> -> vector<8x16xf32>
    %42 = arith.addf %41, %13 : vector<8x16xf32>
    %c0_21 = arith.constant 0 : index
    %c0_22 = arith.constant 0 : index
    %c0_23 = arith.constant 0 : index
    %43 = vector.load %arg8[%c0_21, %c0_22, %c0_23] : memref<1x8x16xf32, #tpu.memory_space<vmem>>, vector<1x8x16xf32>
    %44 = vector.shape_cast %43 : vector<1x8x16xf32> to vector<8x16xf32>
    %45 = vector.shape_cast %42 : vector<8x16xf32> to vector<1x8x16xf32>
    tpu.vector_store %arg8[%c0_21, %c0_22, %c0_23], %45 {strides = array<i32>} : memref<1x8x16xf32, #tpu.memory_space<vmem>>, vector<1x8x16xf32>,
    return
  }
  func.func @transform_0(%arg0: i32) -> (i32, i32, i32) {
    %c0_i32 = arith.constant 0 : i32
    %c0_i32_0 = arith.constant 0 : i32
    %c0_i32_1 = arith.constant 0 : i32
    return %arg0, %c0_i32, %c0_i32_0 : i32, i32, i32
  }
  func.func @transform_1(%arg0: i32) -> (i32, i32) {
    %c0_i32 = arith.constant 0 : i32
    %c0_i32_0 = arith.constant 0 : i32
    %c0_i32_1 = arith.constant 0 : i32
    return %c0_i32, %c0_i32_0 : i32, i32
  }
  func.func @transform_2(%arg0: i32) -> (i32, i32) {
    %c0_i32 = arith.constant 0 : i32
    %c0_i32_0 = arith.constant 0 : i32
    %c0_i32_1 = arith.constant 0 : i32
    return %c0_i32, %c0_i32_0 : i32, i32
  }
  func.func @transform_3(%arg0: i32) -> (i32, i32) {
    %c0_i32 = arith.constant 0 : i32
    %c0_i32_0 = arith.constant 0 : i32
    %c0_i32_1 = arith.constant 0 : i32
    return %c0_i32, %c0_i32_0 : i32, i32
  }
  func.func @transform_4(%arg0: i32) -> (i32, i32) {
    %c0_i32 = arith.constant 0 : i32
    %c0_i32_0 = arith.constant 0 : i32
    %c0_i32_1 = arith.constant 0 : i32
    return %c0_i32, %c0_i32_0 : i32, i32
  }
  func.func @transform_5(%arg0: i32) -> (i32, i32) {
    %c0_i32 = arith.constant 0 : i32
    %c0_i32_0 = arith.constant 0 : i32
    %c0_i32_1 = arith.constant 0 : i32
    return %c0_i32, %c0_i32_0 : i32, i32
  }
  func.func @transform_6(%arg0: i32) -> (i32, i32) {
    %c0_i32 = arith.constant 0 : i32
    %c0_i32_0 = arith.constant 0 : i32
    %c0_i32_1 = arith.constant 0 : i32
    return %c0_i32, %c0_i32_0 : i32, i32
  }
  func.func @transform_7(%arg0: i32) -> (i32, i32, i32) {
    %c0_i32 = arith.constant 0 : i32
    %c0_i32_0 = arith.constant 0 : i32
    %c0_i32_1 = arith.constant 0 : i32
    return %arg0, %c0_i32, %c0_i32_0 : i32, i32, i32
  }
}

</mosaic_0001>

<llo_original>
// kernel: tpu_custom_call.1
$region0: #{tpu_custom_call.1}
  #allocation0 [shape = 'u32[]', space=smem, size = 0x4, offset = 0x4, fixed_abs, tag = 'smem constant byte address 0x4 - core index']
  #allocation1 [shape = 'u32[72,128]{1,0:T(1,128)}', space=vmem, size = 0x9000, scoped, tag = 'internal scratch']
  %s0 = inlined_call_operand.vmem [shape: f32[2,8,16], index: 0, kind: input, shape index: {}]
  %s1 = inlined_call_operand.vmem [shape: f32[8,1], index: 1, kind: input, shape index: {}]
  %s2 = inlined_call_operand.vmem [shape: f32[8,1], index: 2, kind: input, shape index: {}]
  %s3 = inlined_call_operand.vmem [shape: f32[8,24], index: 3, kind: input, shape index: {}]
  %s4 = inlined_call_operand.vmem [shape: f32[8,1], index: 4, kind: input, shape index: {}]
  %s5 = inlined_call_operand.vmem [shape: f32[8,1], index: 5, kind: input, shape index: {}]
  %s6 = inlined_call_operand.vmem [shape: f32[8,24], index: 6, kind: input, shape index: {}]
  %s7 = inlined_call_operand.hbm [shape: f32[2,8,16], index: 7, kind: output, shape index: {}]
  %s8 = sld [smem:[#allocation0]]
  $region61: #{tpu_custom_call.1} parent=0
    _
  %s10 = ssub.s32 1, %s8
  %s11 = scalar_select 0, %s10, %s8
  $region1: #{tpu_custom_call.1} parent=0
    #allocation2 [shape = 'u8[8192]{0}', space=vmem, size = 0x2000, scoped, tag = 'output window, operand 0']
    #allocation3 [shape = 's32[2]{0}', space=sflag, size = 0x8, scoped, tag = 'scoped memory for tpu_custom_call.1']
    %12 = vsyncpa [#allocation3], 0
    %s13 = scalar_lea.sflag [#allocation3], 1
    %14 = vsyncpa %s13, 0
    loop: start=0, step=1, limit=4
    $region2: #{tpu_custom_call.1} parent=1 // loop_pre_header
      _
    $region3: #{tpu_custom_call.1} parent=1 // loop_header
      %s16 = sphi 0, %s20
      %p17 = scmp.ge.s32.totalorder %s16, 4
      %s26 = sphi 0, %s28
      %s29 = sphi 0, %s26
      %s30 = sphi 0, %s29
      %s46 = sphi 0, %s30
      %s50 = sphi 0, %s50
      %s52 = sphi 0, %s50
      %s53 = sphi 0, %s52
      %s67 = sphi 0, %s53
      %s71 = sphi 0, %s71
      %s73 = sphi 0, %s71
      %s74 = sphi 0, %s73
      %s88 = sphi 0, %s74
      %s92 = sphi 0, %s92
      %s94 = sphi 0, %s92
      %s95 = sphi 0, %s94
      %s109 = sphi 0, %s95
      %s113 = sphi 0, %s113
      %s115 = sphi 0, %s113
      %s116 = sphi 0, %s115
      %s130 = sphi 0, %s116
      %s134 = sphi 0, %s134
      %s136 = sphi 0, %s134
      %s137 = sphi 0, %s136
      %s151 = sphi 0, %s137
      %s155 = sphi 0, %s155
      %s157 = sphi 0, %s155
      %s158 = sphi 0, %s157
      %s172 = sphi 0, %s158
      %s178 = sphi 0, %s180
      %s181 = sphi 0, %s178
      %s182 = sphi 0, %s181
      %s198 = sphi 0, %s182
    $region4: #{tpu_custom_call.1} parent=1 // loop_header_branch
      %19 = sbr.rel (%p17) target = $region8
    $region5: #{tpu_custom_call.1} parent=1 // loop_body
      %s21 = ssub.s32 %s16, 1
      %s22 = ssub.s32 %s16, 2
      %s23 = sadd.s32 %s16, 1
      %s24 = ssub.s32 %s16, %s23
      %p25 = scmp.eq.s32.totalorder %s24, 0
      %s27 = sadd.s32 %s26, 1
      %s28 = scalar_select %p25, %s26, %s27
      %p31 = pneg %p25
      %p32 = scmp.eq.s32.totalorder %s16, 1
      %p33 = por %p31, %p32
      %p34 = scmp.ne.s32.totalorder %s26, %s29
      %p35 = scmp.eq.s32.totalorder %s16, 0
      %p36 = por %p34, %p35
      %p37 = scmp.ne.s32.totalorder %s26, %s29
      %p38 = scmp.eq.s32.totalorder %s21, 1
      %p39 = por %p37, %p38
      %p40 = scmp.ne.s32.totalorder %s29, %s30
      %p41 = scmp.eq.s32.totalorder %s21, 0
      %p42 = por %p40, %p41
      %p43 = scmp.ne.s32.totalorder %s29, %s30
      %p44 = scmp.eq.s32.totalorder %s22, 1
      %p45 = por %p43, %p44
      %p47 = scmp.ne.s32.totalorder %s30, %s46
      %p48 = scmp.eq.s32.totalorder %s22, 0
      %p49 = por %p47, %p48
      %s51 = sadd.s32 %s50, 1
      %p54 = scmp.eq.s32.totalorder %s16, 1
      %p55 = scmp.ne.s32.totalorder %s50, %s52
      %p56 = scmp.eq.s32.totalorder %s16, 0
      %p57 = por %p55, %p56
      %p58 = scmp.ne.s32.totalorder %s50, %s52
      %p59 = scmp.eq.s32.totalorder %s21, 1
      %p60 = por %p58, %p59
      %p61 = scmp.ne.s32.totalorder %s52, %s53
      %p62 = scmp.eq.s32.totalorder %s21, 0
      %p63 = por %p61, %p62
      %p64 = scmp.ne.s32.totalorder %s52, %s53
      %p65 = scmp.eq.s32.totalorder %s22, 1
      %p66 = por %p64, %p65
      %p68 = scmp.ne.s32.totalorder %s53, %s67
      %p69 = scmp.eq.s32.totalorder %s22, 0
      %p70 = por %p68, %p69
      %s72 = sadd.s32 %s71, 1
      %p75 = scmp.eq.s32.totalorder %s16, 1
      %p76 = scmp.ne.s32.totalorder %s71, %s73
      %p77 = scmp.eq.s32.totalorder %s16, 0
      %p78 = por %p76, %p77
      %p79 = scmp.ne.s32.totalorder %s71, %s73
      %p80 = scmp.eq.s32.totalorder %s21, 1
      %p81 = por %p79, %p80
      %p82 = scmp.ne.s32.totalorder %s73, %s74
      %p83 = scmp.eq.s32.totalorder %s21, 0
      %p84 = por %p82, %p83
      %p85 = scmp.ne.s32.totalorder %s73, %s74
      %p86 = scmp.eq.s32.totalorder %s22, 1
      %p87 = por %p85, %p86
      %p89 = scmp.ne.s32.totalorder %s74, %s88
      %p90 = scmp.eq.s32.totalorder %s22, 0
      %p91 = por %p89, %p90
      %s93 = sadd.s32 %s92, 1
      %p96 = scmp.eq.s32.totalorder %s16, 1
      %p97 = scmp.ne.s32.totalorder %s92, %s94
      %p98 = scmp.eq.s32.totalorder %s16, 0
      %p99 = por %p97, %p98
      %p100 = scmp.ne.s32.totalorder %s92, %s94
      %p101 = scmp.eq.s32.totalorder %s21, 1
      %p102 = por %p100, %p101
      %p103 = scmp.ne.s32.totalorder %s94, %s95
      %p104 = scmp.eq.s32.totalorder %s21, 0
      %p105 = por %p103, %p104
      %p106 = scmp.ne.s32.totalorder %s94, %s95
      %p107 = scmp.eq.s32.totalorder %s22, 1
      %p108 = por %p106, %p107
      %p110 = scmp.ne.s32.totalorder %s95, %s109
      %p111 = scmp.eq.s32.totalorder %s22, 0
      %p112 = por %p110, %p111
      %s114 = sadd.s32 %s113, 1
      %p117 = scmp.eq.s32.totalorder %s16, 1
      %p118 = scmp.ne.s32.totalorder %s113, %s115
      %p119 = scmp.eq.s32.totalorder %s16, 0
      %p120 = por %p118, %p119
      %p121 = scmp.ne.s32.totalorder %s113, %s115
      %p122 = scmp.eq.s32.totalorder %s21, 1
      %p123 = por %p121, %p122
      %p124 = scmp.ne.s32.totalorder %s115, %s116
      %p125 = scmp.eq.s32.totalorder %s21, 0
      %p126 = por %p124, %p125
      %p127 = scmp.ne.s32.totalorder %s115, %s116
      %p128 = scmp.eq.s32.totalorder %s22, 1
      %p129 = por %p127, %p128
      %p131 = scmp.ne.s32.totalorder %s116, %s130
      %p132 = scmp.eq.s32.totalorder %s22, 0
      %p133 = por %p131, %p132
      %s135 = sadd.s32 %s134, 1
      %p138 = scmp.eq.s32.totalorder %s16, 1
      %p139 = scmp.ne.s32.totalorder %s134, %s136
      %p140 = scmp.eq.s32.totalorder %s16, 0
      %p141 = por %p139, %p140
      %p142 = scmp.ne.s32.totalorder %s134, %s136
      %p143 = scmp.eq.s32.totalorder %s21, 1
      %p144 = por %p142, %p143
      %p145 = scmp.ne.s32.totalorder %s136, %s137
      %p146 = scmp.eq.s32.totalorder %s21, 0
      %p147 = por %p145, %p146
      %p148 = scmp.ne.s32.totalorder %s136, %s137
      %p149 = scmp.eq.s32.totalorder %s22, 1
      %p150 = por %p148, %p149
      %p152 = scmp.ne.s32.totalorder %s137, %s151
      %p153 = scmp.eq.s32.totalorder %s22, 0
      %p154 = por %p152, %p153
      %s156 = sadd.s32 %s155, 1
      %p159 = scmp.eq.s32.totalorder %s16, 1
      %p160 = scmp.ne.s32.totalorder %s155, %s157
      %p161 = scmp.eq.s32.totalorder %s16, 0
      %p162 = por %p160, %p161
      %p163 = scmp.ne.s32.totalorder %s155, %s157
      %p164 = scmp.eq.s32.totalorder %s21, 1
      %p165 = por %p163, %p164
      %p166 = scmp.ne.s32.totalorder %s157, %s158
      %p167 = scmp.eq.s32.totalorder %s21, 0
      %p168 = por %p166, %p167
      %p169 = scmp.ne.s32.totalorder %s157, %s158
      %p170 = scmp.eq.s32.totalorder %s22, 1
      %p171 = por %p169, %p170
      %p173 = scmp.ne.s32.totalorder %s158, %s172
      %p174 = scmp.eq.s32.totalorder %s22, 0
      %p175 = por %p173, %p174
      %s176 = ssub.s32 %s16, %s23
      %p177 = scmp.eq.s32.totalorder %s176, 0
      %s179 = sadd.s32 %s178, 1
      %s180 = scalar_select %p177, %s178, %s179
      %p183 = pneg %p177
      %p184 = scmp.eq.s32.totalorder %s16, 1
      %p185 = por %p183, %p184
      %p186 = scmp.ne.s32.totalorder %s178, %s181
      %p187 = scmp.eq.s32.totalorder %s16, 0
      %p188 = por %p186, %p187
      %p189 = scmp.ne.s32.totalorder %s178, %s181
      %p190 = scmp.eq.s32.totalorder %s21, 1
      %p191 = por %p189, %p190
      %p192 = scmp.ne.s32.totalorder %s181, %s182
      %p193 = scmp.eq.s32.totalorder %s21, 0
      %p194 = por %p192, %p193
      %p195 = scmp.ne.s32.totalorder %s181, %s182
      %p196 = scmp.eq.s32.totalorder %s22, 1
      %p197 = por %p195, %p196
      %p199 = scmp.ne.s32.totalorder %s182, %s198
      %p200 = scmp.eq.s32.totalorder %s22, 0
      %p201 = por %p199, %p200
      %p202 = scmp.le.s32.totalorder 1, %s16
      %p203 = scmp.lt.s32.totalorder %s16, 3
      %p204 = pnand %p202, %p203
      %p205 = pneg %p204
      // Predicated region
      $region9: #{tpu_custom_call.1} parent=5 // pred_check
        _
      $region10: #{tpu_custom_call.1} parent=5 // pred_check_branch
        %207 = sbr.rel (%p204) target = $region12
      $region11: #{tpu_custom_call.1} parent=5 // pred_region
        %s208 = ssub.s32 %s16, 1
        // Predicated region
        $region13: #{tpu_custom_call.1} parent=11 // pred_check
          %p209 = pneg %p63
        $region14: #{tpu_custom_call.1} parent=11 // pred_check_branch
          %211 = sbr.rel (%p209) target = $region16
        $region15: #{tpu_custom_call.1} parent=11 // pred_region
          _
        $region16: #{tpu_custom_call.1} parent=11 // pred_fallthru
          _
        // Predicated region
        $region17: #{tpu_custom_call.1} parent=11 // pred_check
          %p212 = pneg %p84
        $region18: #{tpu_custom_call.1} parent=11 // pred_check_branch
          %214 = sbr.rel (%p212) target = $region20
        $region19: #{tpu_custom_call.1} parent=11 // pred_region
          _
        $region20: #{tpu_custom_call.1} parent=11 // pred_fallthru
          _
        // Predicated region
        $region21: #{tpu_custom_call.1} parent=11 // pred_check
          %p215 = pneg %p105
        $region22: #{tpu_custom_call.1} parent=11 // pred_check_branch
          %217 = sbr.rel (%p215) target = $region24
        $region23: #{tpu_custom_call.1} parent=11 // pred_region
          _
        $region24: #{tpu_custom_call.1} parent=11 // pred_fallthru
          _
        // Predicated region
        $region25: #{tpu_custom_call.1} parent=11 // pred_check
          %p218 = pneg %p126
        $region26: #{tpu_custom_call.1} parent=11 // pred_check_branch
          %220 = sbr.rel (%p218) target = $region28
        $region27: #{tpu_custom_call.1} parent=11 // pred_region
          _
        $region28: #{tpu_custom_call.1} parent=11 // pred_fallthru
          _
        // Predicated region
        $region29: #{tpu_custom_call.1} parent=11 // pred_check
          %p221 = pneg %p147
        $region30: #{tpu_custom_call.1} parent=11 // pred_check_branch
          %223 = sbr.rel (%p221) target = $region32
        $region31: #{tpu_custom_call.1} parent=11 // pred_region
          _
        $region32: #{tpu_custom_call.1} parent=11 // pred_fallthru
          _
        // Predicated region
        $region33: #{tpu_custom_call.1} parent=11 // pred_check
          %p224 = pneg %p168
        $region34: #{tpu_custom_call.1} parent=11 // pred_check_branch
          %226 = sbr.rel (%p224) target = $region36
        $region35: #{tpu_custom_call.1} parent=11 // pred_region
          _
        $region36: #{tpu_custom_call.1} parent=11 // pred_fallthru
          _
      $region12: #{tpu_custom_call.1} parent=5 // pred_fallthru
        _
      %p227 = scmp.lt.s32.totalorder %s16, 2
      // Predicated region
      $region37: #{tpu_custom_call.1} parent=5 // pred_check
        %p228 = pneg %p227
      $region38: #{tpu_custom_call.1} parent=5 // pred_check_branch
        %230 = sbr.rel (%p228) target = $region40
      $region39: #{tpu_custom_call.1} parent=5 // pred_region
        // Predicated region
        $region41: #{tpu_custom_call.1} parent=39 // pred_check
          %p231 = pneg %p36
        $region42: #{tpu_custom_call.1} parent=39 // pred_check_branch
          %233 = sbr.rel (%p231) target = $region44
        $region43: #{tpu_custom_call.1} parent=39 // pred_region
          %p234 = scmp.lt.s32.totalorder %s16, 1
          %s235 = scalar_select %p234, %s16, 1
          %s236 = smul.addr %s235, 8
          %s237 = scalar_lea.vmem %s0, %s236
        $region44: #{tpu_custom_call.1} parent=39 // pred_fallthru
          _
      $region40: #{tpu_custom_call.1} parent=5 // pred_fallthru
        _
      %p238 = scmp.le.s32.totalorder 1, %s16
      %p239 = scmp.lt.s32.totalorder %s16, 3
      %p240 = pnand %p238, %p239
      %p241 = pneg %p240
      // Predicated region
      $region45: #{tpu_custom_call.1} parent=5 // pred_check
        _
      $region46: #{tpu_custom_call.1} parent=5 // pred_check_branch
        %243 = sbr.rel (%p240) target = $region48
      $region47: #{tpu_custom_call.1} parent=5 // pred_region
        %s244 = ssub.s32 %s16, 1
        %p245 = scmp.lt.s32.totalorder %s21, 1
        %s246 = scalar_select %p245, %s21, 1
        %s247 = smul.addr %s246, 8
        %s248 = scalar_lea.vmem %s0, %s247
        %p249 = pneg %p42
        %p250 = pneg %p39
        %p251 = pneg %p63
        %p252 = pneg %p60
        %p253 = pneg %p84
        %p254 = pneg %p81
        %p255 = pneg %p105
        %p256 = pneg %p102
        %p257 = pneg %p126
        %p258 = pneg %p123
        %p259 = pneg %p147
        %p260 = pneg %p144
        %p261 = pneg %p168
        %p262 = pneg %p165
        %p263 = pneg %p194
        %p264 = pneg %p191
        %s265 = sand.u32 %s181, 1
        %s266 = scalar_lea.sflag [#allocation3], %s265
        %s267 = sand.u32 %s181, 1
        %s268 = smul.addr %s267, 8
        %s269 = scalar_lea.vmem [#allocation2], %s268
        %p270 = scmp.lt.s32.totalorder %s21, 1
        %s271 = scalar_select %p270, %s21, 1
        %s272 = smul.addr %s271, 8
        %s273 = scalar_lea.vmem %s0, %s272
        %v274 = vld [vmem:[%s1] sm:$0xff]
        %v275 = vld [vmem:[%s2] sm:$0xff]
        %v276 = vld [vmem:[%s273] sm:$0xff]
        %278 = vset.pattern.permute.xlu0 0
        %279 = vperm.xlu0 %278, %v274
        %v280 = vpop.permute.xlu0 %279
        %v282 = vmul.f32 %v276, %v280
        %284 = vset.pattern.permute.xlu0 0
        %285 = vperm.xlu0 %284, %v275
        %v286 = vpop.permute.xlu0 %285
        %v288 = vadd.f32 %v282, %v286
        %vm289 = vcmp.gt.f32.partialorder %v288, 0.0
        %v290 = vmul.f32 %v288, 1.442695
        %v291 = vpow.pop %v290
        %v292 = vsub.f32 %v291, 1.0
        %v293 = vsel %vm289, %v288, %v292
        %295 = vrot.lane.b32.xlu0 %v293, 1
        %v296 = vpop.permute.xlu0 %295
        %vm298 = vcmask 7168
        %v299 = vsel %vm298, 0.0, %v296
        %vm300 = vcmask 138240
        %v301 = vsel %vm300, %v299, 0.0
        %303 = vrot.lane.b32.xlu0 %v301, 127
        %v304 = vpop.permute.xlu0 %303
        %306 = vrot.lane.b32.xlu0 %v301, 126
        %v307 = vpop.permute.xlu0 %306
        %v309 = vld [vmem:[%s3] sm:$0xff]
        %vm310 = vcmask 195584
        %v312 = vsel %vm310, %v309, 0
        %314 = vmatpush.msra.mxu0 0.0
        %315 = vmatpush.msra.mxu0 0.0
        %316 = vmatpush.msra.mxu0 0.0
        %317 = vmatpush.msra.mxu0 0.0
        %318 = vmatpush.msra.mxu0 0.0
        %319 = vmatpush.msra.mxu0 0.0
        %320 = vmatpush.msra.mxu0 0.0
        %321 = vmatpush.msra.mxu0 0.0
        %322 = vmatpush.msra.mxu0 0.0
        %323 = vmatpush.msra.mxu0 0.0
        %324 = vmatpush.msra.mxu0 0.0
        %325 = vmatpush.msra.mxu0 0.0
        %326 = vmatpush.msra.mxu0 0.0
        %327 = vmatpush.msra.mxu0 %v307
        %328 = vmatpush.msra.mxu0 %v304
        %329 = vmatpush.msra.mxu0 %v301
        %330 = vmatmul.f32.gmra.mxu0 %v312
        %v331 = vpop.f32.mrf.mxu0
        %v332 = vadd.f32 0.0, %v331
        %333 = vdwg.mxu0
        %v334 = vld [vmem:[%s4] sm:$0xff]
        %336 = vset.pattern.permute.xlu0 0
        %337 = vperm.xlu0 %336, %v334
        %v338 = vpop.permute.xlu0 %337
        %v340 = vmul.f32 %v332, %v338
        %v341 = vld [vmem:[%s5] sm:$0xff]
        %343 = vset.pattern.permute.xlu0 0
        %344 = vperm.xlu0 %343, %v341
        %v345 = vpop.permute.xlu0 %344
        %v347 = vadd.f32 %v340, %v345
        %vm348 = vcmp.gt.f32.partialorder %v347, 0.0
        %v349 = vmul.f32 %v347, 1.442695
        %v350 = vpow.pop %v349
        %v351 = vsub.f32 %v350, 1.0
        %v352 = vsel %vm348, %v347, %v351
        %354 = vrot.lane.b32.xlu0 %v352, 1
        %v355 = vpop.permute.xlu0 %354
        %v357 = vsel %vm298, 0.0, %v355
        %v358 = vsel %vm300, %v357, 0.0
        %360 = vrot.lane.b32.xlu0 %v358, 127
        %v361 = vpop.permute.xlu0 %360
        %363 = vrot.lane.b32.xlu0 %v358, 126
        %v364 = vpop.permute.xlu0 %363
        %v366 = vld [vmem:[%s6] sm:$0xff]
        %v368 = vsel %vm310, %v366, 0
        %370 = vmatpush.msra.mxu0 0.0
        %371 = vmatpush.msra.mxu0 0.0
        %372 = vmatpush.msra.mxu0 0.0
        %373 = vmatpush.msra.mxu0 0.0
        %374 = vmatpush.msra.mxu0 0.0
        %375 = vmatpush.msra.mxu0 0.0
        %376 = vmatpush.msra.mxu0 0.0
        %377 = vmatpush.msra.mxu0 0.0
        %378 = vmatpush.msra.mxu0 0.0
        %379 = vmatpush.msra.mxu0 0.0
        %380 = vmatpush.msra.mxu0 0.0
        %381 = vmatpush.msra.mxu0 0.0
        %382 = vmatpush.msra.mxu0 0.0
        %383 = vmatpush.msra.mxu0 %v364
        %384 = vmatpush.msra.mxu0 %v361
        %385 = vmatpush.msra.mxu0 %v358
        %386 = vmatmul.f32.gmra.mxu0 %v368
        %v387 = vpop.f32.mrf.mxu0
        %v388 = vadd.f32 %v293, %v387
        %389 = vdwg.mxu0
        %vm390 = vcmask 130048
        %391 = vst.msk [vmem:[%s269] sm:$0xff] %vm390, %v388
        %s392 = sand.u32 %s181, 1
        %s393 = scalar_lea.sflag [#allocation3], %s392
        %s394 = sand.u32 %s181, 1
        %s395 = smul.addr %s394, 8
        %s396 = scalar_lea.vmem [#allocation2], %s395
        // Predicated region
        $region49: #{tpu_custom_call.1} parent=47 // pred_check
          %p397 = pneg %p191
        $region50: #{tpu_custom_call.1} parent=47 // pred_check_branch
          %399 = sbr.rel (%p397) target = $region52
        $region51: #{tpu_custom_call.1} parent=47 // pred_region
          %401 = vsyncadd %s393, 0
          %s402 = smul.addr %s21, 8
          %s403 = scalar_lea.hbm %s7, %s402
          %s405 = sshll.u32 %s396, 4
          %s406 = int_to_ptr.vmem [resolvable:$true] %s405
          %s407 = sshll.u32 %s403, 4
          %s408 = int_to_ptr.hbm [resolvable:$true] %s407
          %410 = dma.vmem_to_hbm [thread:$0]  %s406, 128, %s408, %s393
        $region52: #{tpu_custom_call.1} parent=47 // pred_fallthru
          _
      $region48: #{tpu_custom_call.1} parent=5 // pred_fallthru
        _
      %p411 = scmp.le.s32.totalorder 2, %s16
      // Predicated region
      $region53: #{tpu_custom_call.1} parent=5 // pred_check
        %p412 = pneg %p411
      $region54: #{tpu_custom_call.1} parent=5 // pred_check_branch
        %414 = sbr.rel (%p412) target = $region56
      $region55: #{tpu_custom_call.1} parent=5 // pred_region
        %s415 = ssub.s32 %s16, 2
        // Predicated region
        $region57: #{tpu_custom_call.1} parent=55 // pred_check
          %p416 = pneg %p197
        $region58: #{tpu_custom_call.1} parent=55 // pred_check_branch
          %418 = sbr.rel (%p416) target = $region60
        $region59: #{tpu_custom_call.1} parent=55 // pred_region
          %s419 = sand.u32 %s182, 1
          %s420 = scalar_lea.sflag [#allocation3], %s419
          %s421 = sand.u32 %s182, 1
          %s422 = smul.addr %s421, 8
          %s423 = scalar_lea.vmem [#allocation2], %s422
          %425 = dma.done %s420, 128
        $region60: #{tpu_custom_call.1} parent=55 // pred_fallthru
          _
      $region56: #{tpu_custom_call.1} parent=5 // pred_fallthru
        _
    $region6: #{tpu_custom_call.1} parent=1 // loop_footer
      %s20 = sadd.s32 1, %s16
    $region7: #{tpu_custom_call.1} parent=1 // loop_footer_branch
      %15 = sbr.rel target = $region3
    $region8: #{tpu_custom_call.1} parent=1 // loop_exit
      _
    %426 = vsyncpa [#allocation3], 1
    %s427 = scalar_lea.sflag [#allocation3], 1
    %428 = vsyncpa %s427, 1

</llo_original>
